<compile_context>
chip_gen: v5e
topology: v5e:2x2
jax: 0.10.0
libtpu: 0.0.40
codegen_flags: <defaults>
</compile_context>

<pallas_src>
import functools

import jax
import jax.numpy as jnp
from jax.experimental import pallas as pl
from jax.experimental.pallas import tpu as pltpu


# ----------------------------------------------------------------------------
# Pallas kernel: gain-only LayerNorm over the last dim of a (rows, D) block
# ----------------------------------------------------------------------------
def _prenorm_ln_kernel(x_ref, g_ref, o_ref, *, eps):
    x = x_ref[...].astype(jnp.float32)               # (rb, D)
    mean = jnp.mean(x, axis=-1, keepdims=True)        # (rb, 1)
    xc = x - mean
    var = jnp.mean(xc * xc, axis=-1, keepdims=True)   # biased (unbiased=False)
    inv = jax.lax.rsqrt(var + eps)                    # EUP
    o_ref[...] = (xc * inv * g_ref[...].astype(jnp.float32)).astype(o_ref.dtype)


# ----------------------------------------------------------------------------
# wrapper
# ----------------------------------------------------------------------------
def _pick_row_block(n_rows, max_block=256):
    """Largest multiple-of-8 block <= max_block that divides n_rows.

    Falls back to the full row count (a block equal to the full array dim is
    always legal) when nothing divides cleanly or the input is tiny.
    """
    if n_rows <= max_block:
        return n_rows
    start = max_block - (max_block % 8)
    for rb in range(start, 7, -8):
        if n_rows % rb == 0:
            return rb
    return n_rows


def layer_norm(x, g, *, row_block=256):
    """Pallas equivalent of the torch `LayerNorm` (gain-only) module."""
    orig_shape = x.shape
    D = orig_shape[-1]
    R = 1
    for s in orig_shape[:-1]:
        R *= s

    x2 = x.reshape(R, D)
    g2 = g.reshape(1, D).astype(x.dtype)
    eps = 1e-5 if x.dtype == jnp.float32 else 1e-3

    rb = _pick_row_block(R, row_block)
    grid = (R // rb,)

    itemsize = jnp.dtype(x.dtype).itemsize
    cost = pl.CostEstimate(
        flops=7 * R * D,                 # mean, center, square, var, scale, mul
        transcendentals=R,               # one rsqrt per row
        bytes_accessed=(2 * R * D + D) * itemsize)

    out = pl.pallas_call(
        functools.partial(_prenorm_ln_kernel, eps=eps),
        out_shape=jax.ShapeDtypeStruct((R, D), x.dtype),
        grid=grid,
        in_specs=[
            pl.BlockSpec((rb, D), lambda i: (i, 0)),   # streamed row tiles
            pl.BlockSpec((1, D), lambda i: (0, 0)),    # gain stays resident
        ],
        out_specs=pl.BlockSpec((rb, D), lambda i: (i, 0)),
        compiler_params=pltpu.CompilerParams(
            dimension_semantics=("parallel",)),
        cost_estimate=cost,
    )(x2, g2)
    return out.reshape(orig_shape)


def pre_norm(g, fn, x, *args, **kwargs):
    """PreNorm.forward: fn(LayerNorm(x), *args, **kwargs)."""
    return fn(layer_norm(x, g), *args, **kwargs)


# ----------------------------------------------------------------------------
# pure-JAX reference for correctness checks
# ----------------------------------------------------------------------------
def _ref_layer_norm(x, g):
    eps = 1e-5 if x.dtype == jnp.float32 else 1e-3
    mean = x.mean(axis=-1, keepdims=True)
    var = ((x - mean) ** 2).mean(axis=-1, keepdims=True)
    return (x - mean) * jax.lax.rsqrt(var + eps) * g


# ----------------------------------------------------------------------------
# demo / self-test
# ----------------------------------------------------------------------------
if __name__ == "__main__":
    key = jax.random.PRNGKey(0)
    kx, kg, kw, kx2, kg2 = jax.random.split(key, 5)

    # small shapes consistent with the module: batch=2, seq=8, dim=32
    B, S, D = 2, 8, 32
    x = jax.random.normal(kx, (B, S, D), jnp.float32)
    g = 1.0 + 0.02 * jax.random.normal(kg, (D,), jnp.float32)

    # stand-in for PreNorm's wrapped `fn` (arbitrary sub-module in torch)
    W = 0.02 * jax.random.normal(kw, (D, D), jnp.float32)
    fn = lambda h: jnp.maximum(h @ W, 0.0)

    out = pre_norm(g, fn, x)
    jax.block_until_ready(out)
    assert out.shape == (B, S, D)

    ref = fn(_ref_layer_norm(x, g))
    assert jnp.allclose(out, ref, atol=1e-5, rtol=1e-5)

    # second check: a shape that exercises the tiled / pipelined grid path
    B2, S2, D2 = 4, 256, 128            # 1024 rows -> grid=(4,) with rb=256
    x_big = jax.random.normal(kx2, (B2, S2, D2), jnp.float32)
    g_big = 1.0 + 0.02 * jax.random.normal(kg2, (D2,), jnp.float32)
    out_big = layer_norm(x_big, g_big)
    jax.block_until_ready(out_big)
    assert out_big.shape == (B2, S2, D2)
    assert jnp.allclose(out_big, _ref_layer_norm(x_big, g_big),
                        atol=1e-5, rtol=1e-5)

    print("KERNEL_OK")
</pallas_src>

<mosaic_0001>
module attributes {stable_mosaic.version = 11 : i64} {
  func.func @_prenorm_ln_kernel(%arg0: i32, %arg1: memref<16x32xf32, #tpu.memory_space<vmem>>, %arg2: memref<1x32xf32, #tpu.memory_space<vmem>>, %arg3: memref<16x32xf32, #tpu.memory_space<vmem>>) attributes {dimension_semantics = [#tpu.dimension_semantics<parallel>], iteration_bounds = array<i64: 1>, scalar_prefetch = 0 : i64, scratch_operands = 0 : i64, tpu.core_type = #tpu.core_type<tc>, window_params = [{transform_indices = @transform_0, window_bounds = array<i64: 16, 32>}, {pipeline_mode = #tpu.pipeline_mode<synchronous>, transform_indices = @transform_1, window_bounds = array<i64: 1, 32>}, {transform_indices = @transform_2, window_bounds = array<i64: 16, 32>}]} {
    %c0 = arith.constant 0 : index
    %c0_0 = arith.constant 0 : index
    %0 = vector.load %arg1[%c0, %c0_0] : memref<16x32xf32, #tpu.memory_space<vmem>>, vector<16x32xf32>
    %cst = arith.constant dense<0.000000e+00> : vector<16xf32>
    %1 = vector.multi_reduction <add>, %0, %cst [1] : vector<16x32xf32> to vector<16xf32>
    %2 = vector.shape_cast %1 : vector<16xf32> to vector<16x1xf32>
    %cst_1 = arith.constant 3.200000e+01 : f32
    %3 = vector.broadcast %cst_1 : f32 to vector<16x1xf32>
    %4 = arith.divf %2, %3 : vector<16x1xf32>
    %5 = vector.broadcast %4 : vector<16x1xf32> to vector<16x32xf32>
    %6 = arith.subf %0, %5 : vector<16x32xf32>
    %7 = arith.mulf %6, %6 : vector<16x32xf32>
    %cst_2 = arith.constant dense<0.000000e+00> : vector<16xf32>
    %8 = vector.multi_reduction <add>, %7, %cst_2 [1] : vector<16x32xf32> to vector<16xf32>
    %9 = vector.shape_cast %8 : vector<16xf32> to vector<16x1xf32>
    %cst_3 = arith.constant 3.200000e+01 : f32
    %10 = vector.broadcast %cst_3 : f32 to vector<16x1xf32>
    %11 = arith.divf %9, %10 : vector<16x1xf32>
    %cst_4 = arith.constant 9.99999974E-6 : f32
    %12 = vector.broadcast %cst_4 : f32 to vector<16x1xf32>
    %13 = arith.addf %11, %12 : vector<16x1xf32>
    %14 = math.rsqrt %13 : vector<16x1xf32>
    %15 = vector.broadcast %14 : vector<16x1xf32> to vector<16x32xf32>
    %16 = arith.mulf %6, %15 : vector<16x32xf32>
    %c0_5 = arith.constant 0 : index
    %c0_6 = arith.constant 0 : index
    %17 = vector.load %arg2[%c0_5, %c0_6] : memref<1x32xf32, #tpu.memory_space<vmem>>, vector<1x32xf32>
    %18 = vector.broadcast %17 : vector<1x32xf32> to vector<16x32xf32>
    %19 = arith.mulf %16, %18 : vector<16x32xf32>
    %c0_7 = arith.constant 0 : index
    %c0_8 = arith.constant 0 : index
    %20 = vector.load %arg3[%c0_7, %c0_8] : memref<16x32xf32, #tpu.memory_space<vmem>>, vector<16x32xf32>
    tpu.vector_store %arg3[%c0_7, %c0_8], %19 {strides = array<i32>} : memref<16x32xf32, #tpu.memory_space<vmem>>, vector<16x32xf32>,
    return
  }
  func.func @transform_0(%arg0: i32) -> (i32, i32) {
    %c0_i32 = arith.constant 0 : i32
    %c0_i32_0 = arith.constant 0 : i32
    return %arg0, %c0_i32 : i32, i32
  }
  func.func @transform_1(%arg0: i32) -> (i32, i32) {
    %c0_i32 = arith.constant 0 : i32
    %c0_i32_0 = arith.constant 0 : i32
    %c0_i32_1 = arith.constant 0 : i32
    return %c0_i32, %c0_i32_0 : i32, i32
  }
  func.func @transform_2(%arg0: i32) -> (i32, i32) {
    %c0_i32 = arith.constant 0 : i32
    %c0_i32_0 = arith.constant 0 : i32
    return %arg0, %c0_i32 : i32, i32
  }
}

</mosaic_0001>

<llo_original>
// kernel: tpu_custom_call.1
$region0: #{tpu_custom_call.1}
  #allocation0 [shape = 'u32[]', space=smem, size = 0x4, offset = 0x4, fixed_abs, tag = 'smem constant byte address 0x4 - core index']
  #allocation1 [shape = 'u32[72,128]{1,0:T(1,128)}', space=vmem, size = 0x9000, scoped, tag = 'internal scratch']
  %s0 = inlined_call_operand.hbm [shape: f32[16,32], index: 0, kind: input, shape index: {}]
  %s1 = inlined_call_operand.hbm [shape: f32[1,32], index: 1, kind: input, shape index: {}]
  %s2 = inlined_call_operand.hbm [shape: f32[16,32], index: 2, kind: output, shape index: {}]
  %s3 = sld [smem:[#allocation0]]
  $region26: #{tpu_custom_call.1} parent=0
    _
  %s5 = ssub.s32 1, %s3
  %s6 = scalar_select 0, %s5, %s3
  $region1: #{tpu_custom_call.1} parent=0
    #allocation2 [shape = 'u8[8192]{0}', space=vmem, size = 0x2000, scoped, tag = 'input window, operand 0, single buffered']
    #allocation3 [shape = 's32[1]{0}', space=sflag, size = 0x4, scoped, tag = 'scoped memory for tpu_custom_call.1']
    #allocation4 [shape = 's32[1]{0}', space=sflag, size = 0x4, scoped, tag = 'scoped memory for tpu_custom_call.1']
    #allocation5 [shape = 'u8[512]{0}', space=vmem, size = 0x400, scoped, tag = 'input window, operand 1, single buffered']
    #allocation6 [shape = 's32[1]{0}', space=sflag, size = 0x4, scoped, tag = 'scoped memory for tpu_custom_call.1']
    #allocation7 [shape = 'u8[8192]{0}', space=vmem, size = 0x2000, scoped, tag = 'output window, operand 0, single buffered']
    %7 = vsyncpa [#allocation3], 0
    %8 = vsyncpa [#allocation6], 0
    %9 = vsyncpa [#allocation4], 0
    // Predicated region
    $region2: #{tpu_custom_call.1} parent=1 // pred_check
      _
    $region3: #{tpu_custom_call.1} parent=1 // pred_check_branch
      %11 = sbr.rel (0) target = $region5
    $region4: #{tpu_custom_call.1} parent=1 // pred_region
      %13 = vsyncadd [#allocation3], 0
      %s14 = sshll.u32 %s0, 4
      %s15 = int_to_ptr.hbm [resolvable:$true] %s14
      %s16 = sshll.u32 [#allocation2], 4
      %s17 = int_to_ptr.vmem [resolvable:$true] %s16
      %22 = dma.hbm_to_vmem [thread:$0]  %s15, 256, %s17, [#allocation3], 128, 128, 8
    $region5: #{tpu_custom_call.1} parent=1 // pred_fallthru
      _
    // Predicated region
    $region6: #{tpu_custom_call.1} parent=1 // pred_check
      _
    $region7: #{tpu_custom_call.1} parent=1 // pred_check_branch
      %24 = sbr.rel (0) target = $region9
    $region8: #{tpu_custom_call.1} parent=1 // pred_region
      %26 = vsyncadd [#allocation6], 0
      %s28 = sshll.u32 %s1, 4
      %s29 = int_to_ptr.hbm [resolvable:$true] %s28
      %s30 = sshll.u32 [#allocation5], 4
      %s31 = int_to_ptr.vmem [resolvable:$true] %s30
      %33 = dma.hbm_to_vmem [thread:$0]  %s29, 16, %s31, [#allocation6]
    $region9: #{tpu_custom_call.1} parent=1 // pred_fallthru
      _
    // Predicated region
    $region10: #{tpu_custom_call.1} parent=1 // pred_check
      _
    $region11: #{tpu_custom_call.1} parent=1 // pred_check_branch
      %35 = sbr.rel (0) target = $region13
    $region12: #{tpu_custom_call.1} parent=1 // pred_region
      %37 = dma.done [#allocation3], 256
    $region13: #{tpu_custom_call.1} parent=1 // pred_fallthru
      _
    // Predicated region
    $region14: #{tpu_custom_call.1} parent=1 // pred_check
      _
    $region15: #{tpu_custom_call.1} parent=1 // pred_check_branch
      %39 = sbr.rel (0) target = $region17
    $region16: #{tpu_custom_call.1} parent=1 // pred_region
      %41 = dma.done [#allocation6], 16
    $region17: #{tpu_custom_call.1} parent=1 // pred_fallthru
      _
    %v42 = vld [vmem:[#allocation2] sm:$0xff]
    %v43 = vld [vmem:[#allocation2 + $0x8] sm:$0xff]
    %vm44 = vcmask 261120
    %v45 = vsel %vm44, %v42, 0.0
    %46 = vadd.xlane.f32.xlu0 %v45
    %v47 = vpop.xlane.xlu0 %46
    %v48 = vsel %vm44, %v43, 0.0
    %49 = vadd.xlane.f32.xlu0 %v48
    %v50 = vpop.xlane.xlu0 %49
    %v51 = vrcp.pop 32.0
    %v52 = vmul.f32 32.0, %v51
    %v53 = vsub.f32 1.0, %v52
    %v54 = vmul.f32 %v51, %v53
    %v55 = vadd.f32 %v51, %v54
    %vm56 = vweird.f32 %v51
    %v57 = vsel %vm56, %v51, %v55
    %v58 = vmul.f32 %v47, %v57
    %v59 = vmul.f32 %v50, %v57
    %v60 = vsub.f32 %v42, %v58
    %v61 = vsub.f32 %v43, %v59
    %v62 = vmul.f32 %v60, %v60
    %v63 = vmul.f32 %v61, %v61
    %v64 = vsel %vm44, %v62, 0.0
    %65 = vadd.xlane.f32.xlu0 %v64
    %v66 = vpop.xlane.xlu0 %65
    %v67 = vsel %vm44, %v63, 0.0
    %68 = vadd.xlane.f32.xlu0 %v67
    %v69 = vpop.xlane.xlu0 %68
    %v70 = vmul.f32 %v66, %v57
    %v71 = vmul.f32 %v69, %v57
    %v72 = vadd.f32 %v70, 1e-05
    %v73 = vadd.f32 %v71, 1e-05
    %v74 = vrsqrt.pop %v72
    %v75 = vmul.f32 %v74, %v72
    %v76 = vmul.f32 %v75, %v74
    %v77 = vmul.f32 0.5, %v76
    %v78 = vsub.f32 1.5, %v77
    %v79 = vmul.f32 %v74, %v78
    %vm80 = vweird.f32 %v72
    %vm81 = vweird.f32 %v74
    %vm82 = vmor %vm80, %vm81
    %v83 = vsel %vm82, %v74, %v79
    %v84 = vrsqrt.pop %v73
    %v85 = vmul.f32 %v84, %v73
    %v86 = vmul.f32 %v85, %v84
    %v87 = vmul.f32 0.5, %v86
    %v88 = vsub.f32 1.5, %v87
    %v89 = vmul.f32 %v84, %v88
    %vm90 = vweird.f32 %v73
    %vm91 = vweird.f32 %v84
    %vm92 = vmor %vm90, %vm91
    %v93 = vsel %vm92, %v84, %v89
    %v94 = vmul.f32 %v60, %v83
    %v95 = vmul.f32 %v61, %v93
    %v96 = vld [vmem:[#allocation5] sm:$0x1]
    %v98 = vperm.slane %v96, 0
    %v100 = vmul.f32 %v94, %v98
    %v101 = vmul.f32 %v95, %v98
    %102 = vst.msk [vmem:[#allocation7] sm:$0xff] %vm44, %v100
    %103 = vst.msk [vmem:[#allocation7 + $0x8] sm:$0xff] %vm44, %v101
    // Predicated region
    $region18: #{tpu_custom_call.1} parent=1 // pred_check
      _
    $region19: #{tpu_custom_call.1} parent=1 // pred_check_branch
      %105 = sbr.rel (0) target = $region21
    $region20: #{tpu_custom_call.1} parent=1 // pred_region
      %107 = vsyncadd [#allocation4], 0
      %s108 = sshll.u32 [#allocation7], 4
      %s109 = int_to_ptr.vmem [resolvable:$true] %s108
      %s110 = sshll.u32 %s2, 4
      %s111 = int_to_ptr.hbm [resolvable:$true] %s110
      %116 = dma.vmem_to_hbm [thread:$0]  %s109, 256, %s111, [#allocation4], 128, 128, 8
    $region21: #{tpu_custom_call.1} parent=1 // pred_fallthru
      _
    // Predicated region
    $region22: #{tpu_custom_call.1} parent=1 // pred_check
      _
    $region23: #{tpu_custom_call.1} parent=1 // pred_check_branch
      %118 = sbr.rel (0) target = $region25
    $region24: #{tpu_custom_call.1} parent=1 // pred_region
      %120 = dma.done [#allocation4], 256
    $region25: #{tpu_custom_call.1} parent=1 // pred_fallthru
      _
    %121 = vsyncpa [#allocation3], 1
    %122 = vsyncpa [#allocation6], 1
    %123 = vsyncpa [#allocation4], 1

</llo_original>
